<compile_context>
chip_gen: v7x
topology: tpu7x:2x2x1
jax: 0.10.0
libtpu: 0.0.40
codegen_flags: <defaults>
</compile_context>

<pallas_src>
import jax
import jax.numpy as jnp
from jax import lax
from jax.experimental import pallas as pl
from jax.experimental.pallas import tpu as pltpu

DIMS = [180, 90, 45, 32, 16, 1]
LANE = 128
# f32 x tile at 8192: 2 x 5.9 MB double buffer + ~6 MB intermediates + ~0.1 MB
# weights -- comfortably under the raised scoped-VMEM limit below on all gens
# (v7x physical VMEM is 64 MiB).
MAX_TILE_B = 8192
VMEM_LIMIT_BYTES = 48 * 1024 * 1024


def _round_up(n, m):
    return ((n + m - 1) // m) * m


def mlp_kernel(x_ref,
               w1_ref, b1_ref, w2_ref, b2_ref, w3_ref, b3_ref,
               w4_ref, b4_ref, w5_ref, b5_ref, o_ref):
    """One batch tile: x_ref [TILE_B, 180] f32 -> o_ref [1, TILE_B] f32."""
    # In-kernel cast to bf16 for the MXU (no host-side cast pass).
    x = x_ref[...].astype(jnp.bfloat16)                       # [TILE_B, 180]

    # Layer 1: contract feature axes of W1 [90,180] and x [TILE_B,180] so the
    # output is [90, TILE_B] -- batch lands on the lane axis with no transpose.
    h = lax.dot_general(w1_ref[...], x, (((1,), (1,)), ((), ())),
                        preferred_element_type=jnp.float32)
    h = jnp.maximum(h + b1_ref[...], 0.0).astype(jnp.bfloat16)

    # Layers 2-4: h = W @ h on the MXU (bf16 in, f32 acc), bias+ReLU on VPU.
    for w_ref, b_ref in ((w2_ref, b2_ref), (w3_ref, b3_ref), (w4_ref, b4_ref)):
        h = jnp.dot(w_ref[...], h, preferred_element_type=jnp.float32)
        h = jnp.maximum(h + b_ref[...], 0.0).astype(jnp.bfloat16)

    # Final 16 -> 1 layer off the MXU: VPU multiply + sublane reduce.
    h = h.astype(jnp.float32)                                  # [16, TILE_B]
    w5 = w5_ref[...].astype(jnp.float32)                       # [16, 1]
    o_ref[...] = jnp.sum(w5 * h, axis=0, keepdims=True) + b5_ref[...]


def mlp_forward(x, params, *, max_tile_b=MAX_TILE_B):
    """x: [B, 180] f32; params: list of (W [d_out, d_in], b [d_out]) (PyTorch layout)."""
    B = x.shape[0]
    max_tile_b = max(LANE, _round_up(max_tile_b, LANE))  # keep 128-lane divisibility

    # Adaptive grid/tile: enough steps to cover B at <= max_tile_b per step;
    # >= 2 steps whenever B spans more than one lane tile so both v7x
    # TensorCores are fed.  Padding is bounded at < 128 columns per tile.
    grid = pl.cdiv(B, max_tile_b)
    if B > LANE:
        grid = max(grid, 2)
    tile_b = _round_up(pl.cdiv(B, grid), LANE)
    b_pad = grid * tile_b

    x_p = x if b_pad == B else jnp.pad(x, ((0, b_pad - B), (0, 0)))

    const_map = lambda i: (0, 0)
    flat_params = []
    in_specs = [pl.BlockSpec((tile_b, DIMS[0]), lambda i: (i, 0))]
    for li, (w, b) in enumerate(params):
        # Last layer's weight is passed as a [16, 1] column for the VPU path.
        w_k = (w.T if li == len(params) - 1 else w).astype(jnp.bfloat16)
        b_k = b.reshape(-1, 1).astype(jnp.float32)
        flat_params += [w_k, b_k]
        in_specs += [pl.BlockSpec(w_k.shape, const_map),
                     pl.BlockSpec(b_k.shape, const_map)]

    out = pl.pallas_call(
        mlp_kernel,
        out_shape=jax.ShapeDtypeStruct((1, b_pad), jnp.float32),
        grid=(grid,),
        in_specs=in_specs,
        out_specs=pl.BlockSpec((1, tile_b), lambda i: (0, i)),
        compiler_params=pltpu.CompilerParams(
            dimension_semantics=("parallel",),      # megacore sharding on v7x
            vmem_limit_bytes=VMEM_LIMIT_BYTES),
    )(x_p, *flat_params)

    return out[0, :B].reshape(B, 1)


def init_params(key):
    """Deterministic init, PyTorch nn.Linear shapes: W [d_out, d_in], b [d_out]."""
    params = []
    for i in range(len(DIMS) - 1):
        din, dout = DIMS[i], DIMS[i + 1]
        key, kw, kb = jax.random.split(key, 3)
        bound = 1.0 / (din ** 0.5)
        w = jax.random.uniform(kw, (dout, din), jnp.float32, -bound, bound)
        b = jax.random.uniform(kb, (dout,), jnp.float32, -bound, bound)
        params.append((w, b))
    return params


def reference_forward(x, params):
    """Pure-JAX reference mirroring the kernel's bf16 quantization of MXU inputs."""
    h = x
    for i, (w, b) in enumerate(params):
        hq = h.astype(jnp.bfloat16).astype(jnp.float32)
        wq = w.astype(jnp.bfloat16).astype(jnp.float32)
        h = hq @ wq.T + b
        if i < len(params) - 1:
            h = jnp.maximum(h, 0.0)
    return h


if __name__ == "__main__":
    key = jax.random.PRNGKey(0)
    key, kx = jax.random.split(key)
    params = init_params(key)

    # Small batch consistent with the module spec (single-tile path).
    B = 8
    x = jax.random.normal(kx, (B, DIMS[0]), jnp.float32)
    out = jax.block_until_ready(mlp_forward(x, params))
    ref = reference_forward(x, params)
    assert out.shape == (B, 1)
    assert jnp.allclose(out, ref, atol=2e-3, rtol=2e-3), (
        f"mismatch vs reference: max abs err {jnp.max(jnp.abs(out - ref))}")

    # Multi-tile (grid > 1, megacore) path with a ragged batch size.
    B2 = 300
    key, kx2 = jax.random.split(key)
    x2 = jax.random.normal(kx2, (B2, DIMS[0]), jnp.float32)
    out2 = jax.block_until_ready(mlp_forward(x2, params, max_tile_b=128))
    ref2 = reference_forward(x2, params)
    assert out2.shape == (B2, 1)
    assert jnp.allclose(out2, ref2, atol=2e-3, rtol=2e-3), (
        f"multi-tile mismatch: max abs err {jnp.max(jnp.abs(out2 - ref2))}")

    print("KERNEL_OK")
</pallas_src>

<mosaic_0001>
module attributes {stable_mosaic.version = 11 : i64} {
  func.func @mlp_kernel(%arg0: i32, %arg1: memref<128x180xf32, #tpu.memory_space<vmem>>, %arg2: memref<90x180xbf16, #tpu.memory_space<vmem>>, %arg3: memref<90x1xf32, #tpu.memory_space<vmem>>, %arg4: memref<45x90xbf16, #tpu.memory_space<vmem>>, %arg5: memref<45x1xf32, #tpu.memory_space<vmem>>, %arg6: memref<32x45xbf16, #tpu.memory_space<vmem>>, %arg7: memref<32x1xf32, #tpu.memory_space<vmem>>, %arg8: memref<16x32xbf16, #tpu.memory_space<vmem>>, %arg9: memref<16x1xf32, #tpu.memory_space<vmem>>, %arg10: memref<16x1xbf16, #tpu.memory_space<vmem>>, %arg11: memref<1x1xf32, #tpu.memory_space<vmem>>, %arg12: memref<1x128xf32, #tpu.memory_space<vmem>>) attributes {dimension_semantics = [#tpu.dimension_semantics<parallel>], iteration_bounds = array<i64: 1>, scalar_prefetch = 0 : i64, scratch_operands = 0 : i64, tpu.core_type = #tpu.core_type<tc>, window_params = [{transform_indices = @transform_0, window_bounds = array<i64: 128, 180>}, {pipeline_mode = #tpu.pipeline_mode<synchronous>, transform_indices = @transform_1, window_bounds = array<i64: 90, 180>}, {pipeline_mode = #tpu.pipeline_mode<synchronous>, transform_indices = @transform_2, window_bounds = array<i64: 90, 1>}, {pipeline_mode = #tpu.pipeline_mode<synchronous>, transform_indices = @transform_3, window_bounds = array<i64: 45, 90>}, {pipeline_mode = #tpu.pipeline_mode<synchronous>, transform_indices = @transform_4, window_bounds = array<i64: 45, 1>}, {pipeline_mode = #tpu.pipeline_mode<synchronous>, transform_indices = @transform_5, window_bounds = array<i64: 32, 45>}, {pipeline_mode = #tpu.pipeline_mode<synchronous>, transform_indices = @transform_6, window_bounds = array<i64: 32, 1>}, {pipeline_mode = #tpu.pipeline_mode<synchronous>, transform_indices = @transform_7, window_bounds = array<i64: 16, 32>}, {pipeline_mode = #tpu.pipeline_mode<synchronous>, transform_indices = @transform_8, window_bounds = array<i64: 16, 1>}, {pipeline_mode = #tpu.pipeline_mode<synchronous>, transform_indices = @transform_9, window_bounds = array<i64: 16, 1>}, {pipeline_mode = #tpu.pipeline_mode<synchronous>, transform_indices = @transform_10, window_bounds = array<i64: 1, 1>}, {transform_indices = @transform_11, window_bounds = array<i64: 1, 128>}]} {
    %c0 = arith.constant 0 : index
    %c0_0 = arith.constant 0 : index
    %0 = vector.load %arg1[%c0, %c0_0] : memref<128x180xf32, #tpu.memory_space<vmem>>, vector<128x180xf32>
    %1 = arith.truncf %0 : vector<128x180xf32> to vector<128x180xbf16>
    %c0_1 = arith.constant 0 : index
    %c0_2 = arith.constant 0 : index
    %2 = vector.load %arg2[%c0_1, %c0_2] : memref<90x180xbf16, #tpu.memory_space<vmem>>, vector<90x180xbf16>
    %cst = arith.constant dense<0.000000e+00> : vector<90x128xf32>
    %3 = tpu.matmul %2, %1, %cst {dimension_numbers = #tpu.dot_dimension_numbers<[1], [1], [0], [0], [0, 0, 1, 0], [], []>} : vector<90x180xbf16>, vector<128x180xbf16>, vector<90x128xf32> -> vector<90x128xf32>
    %c0_3 = arith.constant 0 : index
    %c0_4 = arith.constant 0 : index
    %4 = vector.load %arg3[%c0_3, %c0_4] : memref<90x1xf32, #tpu.memory_space<vmem>>, vector<90x1xf32>
    %5 = vector.broadcast %4 : vector<90x1xf32> to vector<90x128xf32>
    %6 = arith.addf %3, %5 : vector<90x128xf32>
    %cst_5 = arith.constant 0.000000e+00 : f32
    %7 = vector.broadcast %cst_5 : f32 to vector<90x128xf32>
    %8 = arith.maximumf %6, %7 : vector<90x128xf32>
    %9 = arith.truncf %8 : vector<90x128xf32> to vector<90x128xbf16>
    %c0_6 = arith.constant 0 : index
    %c0_7 = arith.constant 0 : index
    %10 = vector.load %arg4[%c0_6, %c0_7] : memref<45x90xbf16, #tpu.memory_space<vmem>>, vector<45x90xbf16>
    %cst_8 = arith.constant dense<0.000000e+00> : vector<45x128xf32>
    %11 = tpu.matmul %10, %9, %cst_8 {dimension_numbers = #tpu.dot_dimension_numbers<[1], [0], [0], [1], [0, 0, 1, 1], [], []>} : vector<45x90xbf16>, vector<90x128xbf16>, vector<45x128xf32> -> vector<45x128xf32>
    %c0_9 = arith.constant 0 : index
    %c0_10 = arith.constant 0 : index
    %12 = vector.load %arg5[%c0_9, %c0_10] : memref<45x1xf32, #tpu.memory_space<vmem>>, vector<45x1xf32>
    %13 = vector.broadcast %12 : vector<45x1xf32> to vector<45x128xf32>
    %14 = arith.addf %11, %13 : vector<45x128xf32>
    %cst_11 = arith.constant 0.000000e+00 : f32
    %15 = vector.broadcast %cst_11 : f32 to vector<45x128xf32>
    %16 = arith.maximumf %14, %15 : vector<45x128xf32>
    %17 = arith.truncf %16 : vector<45x128xf32> to vector<45x128xbf16>
    %c0_12 = arith.constant 0 : index
    %c0_13 = arith.constant 0 : index
    %18 = vector.load %arg6[%c0_12, %c0_13] : memref<32x45xbf16, #tpu.memory_space<vmem>>, vector<32x45xbf16>
    %cst_14 = arith.constant dense<0.000000e+00> : vector<32x128xf32>
    %19 = tpu.matmul %18, %17, %cst_14 {dimension_numbers = #tpu.dot_dimension_numbers<[1], [0], [0], [1], [0, 0, 1, 1], [], []>} : vector<32x45xbf16>, vector<45x128xbf16>, vector<32x128xf32> -> vector<32x128xf32>
    %c0_15 = arith.constant 0 : index
    %c0_16 = arith.constant 0 : index
    %20 = vector.load %arg7[%c0_15, %c0_16] : memref<32x1xf32, #tpu.memory_space<vmem>>, vector<32x1xf32>
    %21 = vector.broadcast %20 : vector<32x1xf32> to vector<32x128xf32>
    %22 = arith.addf %19, %21 : vector<32x128xf32>
    %cst_17 = arith.constant 0.000000e+00 : f32
    %23 = vector.broadcast %cst_17 : f32 to vector<32x128xf32>
    %24 = arith.maximumf %22, %23 : vector<32x128xf32>
    %25 = arith.truncf %24 : vector<32x128xf32> to vector<32x128xbf16>
    %c0_18 = arith.constant 0 : index
    %c0_19 = arith.constant 0 : index
    %26 = vector.load %arg8[%c0_18, %c0_19] : memref<16x32xbf16, #tpu.memory_space<vmem>>, vector<16x32xbf16>
    %cst_20 = arith.constant dense<0.000000e+00> : vector<16x128xf32>
    %27 = tpu.matmul %26, %25, %cst_20 {dimension_numbers = #tpu.dot_dimension_numbers<[1], [0], [0], [1], [0, 0, 1, 1], [], []>} : vector<16x32xbf16>, vector<32x128xbf16>, vector<16x128xf32> -> vector<16x128xf32>
    %c0_21 = arith.constant 0 : index
    %c0_22 = arith.constant 0 : index
    %28 = vector.load %arg9[%c0_21, %c0_22] : memref<16x1xf32, #tpu.memory_space<vmem>>, vector<16x1xf32>
    %29 = vector.broadcast %28 : vector<16x1xf32> to vector<16x128xf32>
    %30 = arith.addf %27, %29 : vector<16x128xf32>
    %cst_23 = arith.constant 0.000000e+00 : f32
    %31 = vector.broadcast %cst_23 : f32 to vector<16x128xf32>
    %32 = arith.maximumf %30, %31 : vector<16x128xf32>
    %33 = arith.truncf %32 : vector<16x128xf32> to vector<16x128xbf16>
    %34 = arith.extf %33 : vector<16x128xbf16> to vector<16x128xf32>
    %c0_24 = arith.constant 0 : index
    %c0_25 = arith.constant 0 : index
    %35 = vector.load %arg10[%c0_24, %c0_25] : memref<16x1xbf16, #tpu.memory_space<vmem>>, vector<16x1xbf16>
    %36 = arith.extf %35 : vector<16x1xbf16> to vector<16x1xf32>
    %37 = vector.broadcast %36 : vector<16x1xf32> to vector<16x128xf32>
    %38 = arith.mulf %37, %34 : vector<16x128xf32>
    %cst_26 = arith.constant dense<0.000000e+00> : vector<128xf32>
    %39 = vector.multi_reduction <add>, %38, %cst_26 [0] : vector<16x128xf32> to vector<128xf32>
    %40 = vector.shape_cast %39 : vector<128xf32> to vector<1x128xf32>
    %c0_27 = arith.constant 0 : index
    %c0_28 = arith.constant 0 : index
    %41 = vector.load %arg11[%c0_27, %c0_28] : memref<1x1xf32, #tpu.memory_space<vmem>>, vector<1x1xf32>
    %42 = vector.broadcast %41 : vector<1x1xf32> to vector<1x128xf32>
    %43 = arith.addf %40, %42 : vector<1x128xf32>
    %c0_29 = arith.constant 0 : index
    %c0_30 = arith.constant 0 : index
    %44 = vector.load %arg12[%c0_29, %c0_30] : memref<1x128xf32, #tpu.memory_space<vmem>>, vector<1x128xf32>
    tpu.vector_store %arg12[%c0_29, %c0_30], %43 {strides = array<i32>} : memref<1x128xf32, #tpu.memory_space<vmem>>, vector<1x128xf32>,
    return
  }
  func.func @transform_0(%arg0: i32) -> (i32, i32) {
    %c0_i32 = arith.constant 0 : i32
    %c0_i32_0 = arith.constant 0 : i32
    return %arg0, %c0_i32 : i32, i32
  }
  func.func @transform_1(%arg0: i32) -> (i32, i32) {
    %c0_i32 = arith.constant 0 : i32
    %c0_i32_0 = arith.constant 0 : i32
    %c0_i32_1 = arith.constant 0 : i32
    return %c0_i32, %c0_i32_0 : i32, i32
  }
  func.func @transform_2(%arg0: i32) -> (i32, i32) {
    %c0_i32 = arith.constant 0 : i32
    %c0_i32_0 = arith.constant 0 : i32
    %c0_i32_1 = arith.constant 0 : i32
    return %c0_i32, %c0_i32_0 : i32, i32
  }
  func.func @transform_3(%arg0: i32) -> (i32, i32) {
    %c0_i32 = arith.constant 0 : i32
    %c0_i32_0 = arith.constant 0 : i32
    %c0_i32_1 = arith.constant 0 : i32
    return %c0_i32, %c0_i32_0 : i32, i32
  }
  func.func @transform_4(%arg0: i32) -> (i32, i32) {
    %c0_i32 = arith.constant 0 : i32
    %c0_i32_0 = arith.constant 0 : i32
    %c0_i32_1 = arith.constant 0 : i32
    return %c0_i32, %c0_i32_0 : i32, i32
  }
  func.func @transform_5(%arg0: i32) -> (i32, i32) {
    %c0_i32 = arith.constant 0 : i32
    %c0_i32_0 = arith.constant 0 : i32
    %c0_i32_1 = arith.constant 0 : i32
    return %c0_i32, %c0_i32_0 : i32, i32
  }
  func.func @transform_6(%arg0: i32) -> (i32, i32) {
    %c0_i32 = arith.constant 0 : i32
    %c0_i32_0 = arith.constant 0 : i32
    %c0_i32_1 = arith.constant 0 : i32
    return %c0_i32, %c0_i32_0 : i32, i32
  }
  func.func @transform_7(%arg0: i32) -> (i32, i32) {
    %c0_i32 = arith.constant 0 : i32
    %c0_i32_0 = arith.constant 0 : i32
    %c0_i32_1 = arith.constant 0 : i32
    return %c0_i32, %c0_i32_0 : i32, i32
  }
  func.func @transform_8(%arg0: i32) -> (i32, i32) {
    %c0_i32 = arith.constant 0 : i32
    %c0_i32_0 = arith.constant 0 : i32
    %c0_i32_1 = arith.constant 0 : i32
    return %c0_i32, %c0_i32_0 : i32, i32
  }
  func.func @transform_9(%arg0: i32) -> (i32, i32) {
    %c0_i32 = arith.constant 0 : i32
    %c0_i32_0 = arith.constant 0 : i32
    %c0_i32_1 = arith.constant 0 : i32
    return %c0_i32, %c0_i32_0 : i32, i32
  }
  func.func @transform_10(%arg0: i32) -> (i32, i32) {
    %c0_i32 = arith.constant 0 : i32
    %c0_i32_0 = arith.constant 0 : i32
    %c0_i32_1 = arith.constant 0 : i32
    return %c0_i32, %c0_i32_0 : i32, i32
  }
  func.func @transform_11(%arg0: i32) -> (i32, i32) {
    %c0_i32 = arith.constant 0 : i32
    %c0_i32_0 = arith.constant 0 : i32
    return %c0_i32, %arg0 : i32, i32
  }
}

</mosaic_0001>

<llo_original>
// kernel: tpu_custom_call.1
$region0: #{tpu_custom_call.1}
  #allocation0 [shape = 'u32[]', space=smem, size = 0x4, offset = 0x4, fixed_abs, tag = 'smem constant byte address 0x4 - core index']
  #allocation1 [shape = 'u32[144,128]{1,0:T(1,128)}', space=vmem, size = 0x12000, scoped, tag = 'internal scratch']
  #allocation2 [shape = 'f32[1,1]{1,0:T(1,128)S(1)}', space=vmem, size = 0x200, scoped, tag = 'scoped memory for tpu_custom_call.1']
  %s0 = inlined_call_operand.vmem [shape: f32[128,180], index: 0, kind: input, shape index: {}]
  %s1 = inlined_call_operand.vmem [shape: bf16[90,180], index: 1, kind: input, shape index: {}]
  %s2 = inlined_call_operand.vmem [shape: f32[90,1], index: 2, kind: input, shape index: {}]
  %s3 = inlined_call_operand.vmem [shape: bf16[45,90], index: 3, kind: input, shape index: {}]
  %s4 = inlined_call_operand.vmem [shape: f32[45,1], index: 4, kind: input, shape index: {}]
  %s5 = inlined_call_operand.vmem [shape: bf16[32,45], index: 5, kind: input, shape index: {}]
  %s6 = inlined_call_operand.vmem [shape: f32[32,1], index: 6, kind: input, shape index: {}]
  %s7 = inlined_call_operand.vmem [shape: bf16[16,32], index: 7, kind: input, shape index: {}]
  %s8 = inlined_call_operand.vmem [shape: f32[16,1], index: 8, kind: input, shape index: {}]
  %s9 = inlined_call_operand.vmem [shape: bf16[16,1], index: 9, kind: input, shape index: {}]
  %s10 = inlined_call_operand.<no memory space> [shape: f32[1,1], index: 10, kind: input, shape index: {}]
  %s11 = inlined_call_operand.hbm [shape: f32[1,128], index: 11, kind: output, shape index: {}]
  %s12 = sld [smem:[#allocation0]]
  $region54: #{tpu_custom_call.1} parent=0
    _
  %s14 = ssub.s32 1, %s12
  %s15 = scalar_select 0, %s14, %s12
  %v16 = vstv %s10
  %17 = vst [vmem:[#allocation2] sm:$0x1] %v16
  $region1: #{tpu_custom_call.1} parent=0
    #allocation3 [shape = 'u8[512]{0}', space=vmem, size = 0x400, scoped, tag = 'output window, operand 0, single buffered']
    #allocation4 [shape = 's32[1]{0}', space=sflag, size = 0x4, scoped, tag = 'scoped memory for tpu_custom_call.1']
    %18 = vsyncpa [#allocation4], 0
    // Predicated region
    $region2: #{tpu_custom_call.1} parent=1 // pred_check
      _
    $region3: #{tpu_custom_call.1} parent=1 // pred_check_branch
      %20 = sbr.rel (0) target = $region5
    $region4: #{tpu_custom_call.1} parent=1 // pred_region
      _
    $region5: #{tpu_custom_call.1} parent=1 // pred_fallthru
      _
    // Predicated region
    $region6: #{tpu_custom_call.1} parent=1 // pred_check
      _
    $region7: #{tpu_custom_call.1} parent=1 // pred_check_branch
      %22 = sbr.rel (0) target = $region9
    $region8: #{tpu_custom_call.1} parent=1 // pred_region
      _
    $region9: #{tpu_custom_call.1} parent=1 // pred_fallthru
      _
    // Predicated region
    $region10: #{tpu_custom_call.1} parent=1 // pred_check
      _
    $region11: #{tpu_custom_call.1} parent=1 // pred_check_branch
      %24 = sbr.rel (0) target = $region13
    $region12: #{tpu_custom_call.1} parent=1 // pred_region
      _
    $region13: #{tpu_custom_call.1} parent=1 // pred_fallthru
      _
    // Predicated region
    $region14: #{tpu_custom_call.1} parent=1 // pred_check
      _
    $region15: #{tpu_custom_call.1} parent=1 // pred_check_branch
      %26 = sbr.rel (0) target = $region17
    $region16: #{tpu_custom_call.1} parent=1 // pred_region
      _
    $region17: #{tpu_custom_call.1} parent=1 // pred_fallthru
      _
    // Predicated region
    $region18: #{tpu_custom_call.1} parent=1 // pred_check
      _
    $region19: #{tpu_custom_call.1} parent=1 // pred_check_branch
      %28 = sbr.rel (0) target = $region21
    $region20: #{tpu_custom_call.1} parent=1 // pred_region
      _
    $region21: #{tpu_custom_call.1} parent=1 // pred_fallthru
      _
    // Predicated region
    $region22: #{tpu_custom_call.1} parent=1 // pred_check
      _
    $region23: #{tpu_custom_call.1} parent=1 // pred_check_branch
      %30 = sbr.rel (0) target = $region25
    $region24: #{tpu_custom_call.1} parent=1 // pred_region
      _
    $region25: #{tpu_custom_call.1} parent=1 // pred_fallthru
      _
    // Predicated region
    $region26: #{tpu_custom_call.1} parent=1 // pred_check
      _
    $region27: #{tpu_custom_call.1} parent=1 // pred_check_branch
      %32 = sbr.rel (0) target = $region29
    $region28: #{tpu_custom_call.1} parent=1 // pred_region
      _
    $region29: #{tpu_custom_call.1} parent=1 // pred_fallthru
      _
    // Predicated region
    $region30: #{tpu_custom_call.1} parent=1 // pred_check
      _
    $region31: #{tpu_custom_call.1} parent=1 // pred_check_branch
      %34 = sbr.rel (0) target = $region33
    $region32: #{tpu_custom_call.1} parent=1 // pred_region
      _
    $region33: #{tpu_custom_call.1} parent=1 // pred_fallthru
      _
    // Predicated region
    $region34: #{tpu_custom_call.1} parent=1 // pred_check
      _
    $region35: #{tpu_custom_call.1} parent=1 // pred_check_branch
      %36 = sbr.rel (0) target = $region37
    $region36: #{tpu_custom_call.1} parent=1 // pred_region
      _
    $region37: #{tpu_custom_call.1} parent=1 // pred_fallthru
      _
    // Predicated region
    $region38: #{tpu_custom_call.1} parent=1 // pred_check
      _
    $region39: #{tpu_custom_call.1} parent=1 // pred_check_branch
      %38 = sbr.rel (0) target = $region41
    $region40: #{tpu_custom_call.1} parent=1 // pred_region
      _
    $region41: #{tpu_custom_call.1} parent=1 // pred_fallthru
      _
    // Predicated region
    $region42: #{tpu_custom_call.1} parent=1 // pred_check
      _
    $region43: #{tpu_custom_call.1} parent=1 // pred_check_branch
      %40 = sbr.rel (0) target = $region45
    $region44: #{tpu_custom_call.1} parent=1 // pred_region
      _
    $region45: #{tpu_custom_call.1} parent=1 // pred_fallthru
      _
    %v42 = vld [vmem:[%s0] sm:$0xff]
    %v43 = vld [vmem:[%s0 + $0x8] sm:$0xff]
    %v44 = vld [vmem:[%s0 + $0x10] sm:$0xff]
    %v45 = vld [vmem:[%s0 + $0x18] sm:$0xff]
    %v46 = vld [vmem:[%s0 + $0x20] sm:$0xff]
    %v47 = vld [vmem:[%s0 + $0x28] sm:$0xff]
    %v48 = vld [vmem:[%s0 + $0x30] sm:$0xff]
    %v49 = vld [vmem:[%s0 + $0x38] sm:$0xff]
    %v50 = vld [vmem:[%s0 + $0x40] sm:$0xff]
    %v51 = vld [vmem:[%s0 + $0x48] sm:$0xff]
    %v52 = vld [vmem:[%s0 + $0x50] sm:$0xff]
    %v53 = vld [vmem:[%s0 + $0x58] sm:$0xff]
    %v54 = vld [vmem:[%s0 + $0x60] sm:$0xff]
    %v55 = vld [vmem:[%s0 + $0x68] sm:$0xff]
    %v56 = vld [vmem:[%s0 + $0x70] sm:$0xff]
    %v57 = vld [vmem:[%s0 + $0x78] sm:$0xff]
    %v58 = vld [vmem:[%s0 + $0x80] sm:$0xff]
    %v59 = vld [vmem:[%s0 + $0x88] sm:$0xff]
    %v60 = vld [vmem:[%s0 + $0x90] sm:$0xff]
    %v61 = vld [vmem:[%s0 + $0x98] sm:$0xff]
    %v62 = vld [vmem:[%s0 + $0xa0] sm:$0xff]
    %v63 = vld [vmem:[%s0 + $0xa8] sm:$0xff]
    %v64 = vld [vmem:[%s0 + $0xb0] sm:$0xff]
    %v65 = vld [vmem:[%s0 + $0xb8] sm:$0xff]
    %v66 = vld [vmem:[%s0 + $0xc0] sm:$0xff]
    %v67 = vld [vmem:[%s0 + $0xc8] sm:$0xff]
    %v68 = vld [vmem:[%s0 + $0xd0] sm:$0xff]
    %v69 = vld [vmem:[%s0 + $0xd8] sm:$0xff]
    %v70 = vld [vmem:[%s0 + $0xe0] sm:$0xff]
    %v71 = vld [vmem:[%s0 + $0xe8] sm:$0xff]
    %v72 = vld [vmem:[%s0 + $0xf0] sm:$0xff]
    %v73 = vld [vmem:[%s0 + $0xf8] sm:$0xff]
    %v74 = vpack.c.bf16 %v44, %v42
    %v75 = vpack.c.bf16 %v45, %v43
    %v76 = vpack.c.bf16 %v48, %v46
    %v77 = vpack.c.bf16 %v49, %v47
    %v78 = vpack.c.bf16 %v52, %v50
    %v79 = vpack.c.bf16 %v53, %v51
    %v80 = vpack.c.bf16 %v56, %v54
    %v81 = vpack.c.bf16 %v57, %v55
    %v82 = vpack.c.bf16 %v60, %v58
    %v83 = vpack.c.bf16 %v61, %v59
    %v84 = vpack.c.bf16 %v64, %v62
    %v85 = vpack.c.bf16 %v65, %v63
    %v86 = vpack.c.bf16 %v68, %v66
    %v87 = vpack.c.bf16 %v69, %v67
    %v88 = vpack.c.bf16 %v72, %v70
    %v89 = vpack.c.bf16 %v73, %v71
    %v90 = vld [vmem:[%s1] sm:$0xff]
    %v91 = vld [vmem:[%s1 + $0x8] sm:$0xff]
    %v92 = vld [vmem:[%s1 + $0x10] sm:$0xff]
    %v93 = vld [vmem:[%s1 + $0x18] sm:$0xff]
    %v94 = vld [vmem:[%s1 + $0x20] sm:$0xff]
    %v95 = vld [vmem:[%s1 + $0x28] sm:$0xff]
    %v96 = vld [vmem:[%s1 + $0x30] sm:$0xff]
    %v97 = vld [vmem:[%s1 + $0x38] sm:$0xff]
    %v98 = vld [vmem:[%s1 + $0x40] sm:$0xff]
    %v99 = vld [vmem:[%s1 + $0x48] sm:$0xff]
    %v100 = vld [vmem:[%s1 + $0x50] sm:$0xff]
    %v101 = vld [vmem:[%s1 + $0x58] sm:$0x11]
    %v102 = vld [vmem:[%s2] sm:$0xff]
    %v103 = vld [vmem:[%s2 + $0x8] sm:$0xff]
    %v104 = vld [vmem:[%s2 + $0x10] sm:$0xff]
    %v105 = vld [vmem:[%s2 + $0x18] sm:$0xff]
    %v106 = vld [vmem:[%s2 + $0x20] sm:$0xff]
    %v107 = vld [vmem:[%s2 + $0x28] sm:$0xff]
    %v108 = vld [vmem:[%s2 + $0x30] sm:$0xff]
    %v109 = vld [vmem:[%s2 + $0x38] sm:$0xff]
    %v110 = vld [vmem:[%s2 + $0x40] sm:$0xff]
    %v111 = vld [vmem:[%s2 + $0x48] sm:$0xff]
    %v112 = vld [vmem:[%s2 + $0x50] sm:$0xff]
    %v113 = vld [vmem:[%s2 + $0x58] sm:$0x3]
    %115 = vset.pattern.permute.xlu0 0
    %116 = vperm.xlu0 %115, %v102
    %v117 = vpop.permute.xlu0 %116
    %120 = vset.pattern.permute.xlu0 0
    %121 = vperm.xlu0 %120, %v103
    %v122 = vpop.permute.xlu0 %121
    %125 = vset.pattern.permute.xlu0 0
    %126 = vperm.xlu0 %125, %v104
    %v127 = vpop.permute.xlu0 %126
    %130 = vset.pattern.permute.xlu0 0
    %131 = vperm.xlu0 %130, %v105
    %v132 = vpop.permute.xlu0 %131
    %135 = vset.pattern.permute.xlu0 0
    %136 = vperm.xlu0 %135, %v106
    %v137 = vpop.permute.xlu0 %136
    %140 = vset.pattern.permute.xlu0 0
    %141 = vperm.xlu0 %140, %v107
    %v142 = vpop.permute.xlu0 %141
    %145 = vset.pattern.permute.xlu0 0
    %146 = vperm.xlu0 %145, %v108
    %v147 = vpop.permute.xlu0 %146
    %150 = vset.pattern.permute.xlu0 0
    %151 = vperm.xlu0 %150, %v109
    %v152 = vpop.permute.xlu0 %151
    %155 = vset.pattern.permute.xlu0 0
    %156 = vperm.xlu0 %155, %v110
    %v157 = vpop.permute.xlu0 %156
    %160 = vset.pattern.permute.xlu0 0
    %161 = vperm.xlu0 %160, %v111
    %v162 = vpop.permute.xlu0 %161
    %165 = vset.pattern.permute.xlu0 0
    %166 = vperm.xlu0 %165, %v112
    %v167 = vpop.permute.xlu0 %166
    %170 = vset.pattern.permute.xlu0 0
    %171 = vperm.xlu0 %170, %v113
    %v172 = vpop.permute.xlu0 %171
    %v186 = vunpack.c.l.b16 %v90
    %v187 = vunpack.c.h.b16 %v90
    %v188 = vunpack.c.l.b16 %v91
    %v189 = vunpack.c.h.b16 %v91
    %v190 = vunpack.c.l.b16 %v92
    %v191 = vunpack.c.h.b16 %v92
    %v192 = vunpack.c.l.b16 %v93
    %v193 = vunpack.c.h.b16 %v93
    %v194 = vunpack.c.l.b16 %v94
    %v195 = vunpack.c.h.b16 %v94
    %v196 = vunpack.c.l.b16 %v95
    %v197 = vunpack.c.h.b16 %v95
    %v198 = vunpack.c.l.b16 %v96
    %v199 = vunpack.c.h.b16 %v96
    %v200 = vunpack.c.l.b16 %v97
    %v201 = vunpack.c.h.b16 %v97
    %v202 = vunpack.c.l.b16 %v98
    %v203 = vunpack.c.h.b16 %v98
    %v204 = vunpack.c.l.b16 %v99
    %v205 = vunpack.c.h.b16 %v99
    %v206 = vunpack.c.l.b16 %v100
    %v207 = vunpack.c.h.b16 %v100
    %v208 = vunpack.c.l.b16 %v101
    %v209 = vunpack.c.h.b16 %v101
    %v210 = vpack.c.b16 %v188, %v186
    %v211 = vpack.c.b16 %v189, %v187
    %v212 = vpack.c.b16 %v192, %v190
    %v213 = vpack.c.b16 %v193, %v191
    %v214 = vpack.c.b16 %v196, %v194
    %v215 = vpack.c.b16 %v197, %v195
    %v216 = vpack.c.b16 %v200, %v198
    %v217 = vpack.c.b16 %v201, %v199
    %v218 = vpack.c.b16 %v204, %v202
    %v219 = vpack.c.b16 %v205, %v203
    %v220 = vpack.c.b16 %v208, %v206
    %v221 = vpack.c.b16 %v209, %v207
    %vm228 = vcmask 424960
    %v230 = vsel %vm228, %v211, 0
    %v233 = vsel %vm228, %v213, 0
    %v236 = vsel %vm228, %v215, 0
    %v239 = vsel %vm228, %v217, 0
    %v242 = vsel %vm228, %v219, 0
    %v245 = vsel %vm228, %v221, 0
    %v248 = vsel %vm228, %v75, 0
    %v251 = vsel %vm228, %v77, 0
    %v254 = vsel %vm228, %v79, 0
    %v257 = vsel %vm228, %v81, 0
    %v260 = vsel %vm228, %v83, 0
    %v263 = vsel %vm228, %v85, 0
    %v266 = vsel %vm228, %v87, 0
    %v269 = vsel %vm228, %v89, 0
    %271 = vmatprep.subr.bf16.mxu0 %v248
    %272 = vmatpush1.bf16.xpose.msra.mxu0 %v74
    %273 = vmatprep.subr.bf16.mxu0 %v251
    %274 = vmatpush1.bf16.xpose.msra.mxu0 %v76
    %275 = vmatprep.subr.bf16.mxu0 %v254
    %276 = vmatpush1.bf16.xpose.msra.mxu0 %v78
    %277 = vmatprep.subr.bf16.mxu0 %v257
    %278 = vmatpush1.bf16.xpose.msra.mxu0 %v80
    %279 = vmatprep.subr.bf16.mxu0 %v260
    %280 = vmatpush1.bf16.xpose.msra.mxu0 %v82
    %281 = vmatprep.subr.bf16.mxu0 %v263
    %282 = vmatpush1.bf16.xpose.msra.mxu0 %v84
    %283 = vmatprep.subr.bf16.mxu0 %v266
    %284 = vmatpush1.bf16.xpose.msra.mxu0 %v86
    %285 = vmatprep.subr.bf16.mxu0 %v269
    %286 = vmatpush1.bf16.xpose.msra.mxu0 %v88
    %287 = vmatprep.subr.bf16.mxu0 0
    %288 = vmatpush1.bf16.xpose.msra.mxu0 0
    %289 = vmatprep.subr.bf16.mxu0 0
    %290 = vmatpush1.bf16.xpose.msra.mxu0 0
    %291 = vmatprep.subr.bf16.mxu0 0
    %292 = vmatpush1.bf16.xpose.msra.mxu0 0
    %293 = vmatprep.subr.bf16.mxu0 0
    %294 = vmatpush1.bf16.xpose.msra.mxu0 0
    %295 = vmatprep.subr.bf16.mxu0 0
    %296 = vmatpush1.bf16.xpose.msra.mxu0 0
    %297 = vmatprep.subr.bf16.mxu0 0
    %298 = vmatpush1.bf16.xpose.msra.mxu0 0
    %299 = vmatprep.subr.bf16.mxu0 0
    %300 = vmatpush1.bf16.xpose.msra.mxu0 0
    %301 = vmatprep.subr.bf16.mxu0 0
    %302 = vmatpush1.bf16.xpose.msra.mxu0 0
    %303 = vmatprep.mubr.bf16.mxu0 %v230
    %304 = vmatmul.mubr.bf16.gmra.mrb[0].mxu0 %v210
    %v305 = vpop.f32.mrb[0].mxu0
    %v306 = vadd.f32 %v117, %v305
    %v307 = vpop.f32.mrb[0].mxu0
    %v308 = vpop.f32.mrb[0].mxu0
    %v309 = vadd.f32 %v122, %v308
    %v310 = vpop.f32.mrb[0].mxu0
    %311 = vmatprep.mubr.bf16.mxu0 %v233
    %312 = vmatmul.mubr.bf16.gmra.mrb[0].mxu0 %v212
    %v313 = vpop.f32.mrb[0].mxu0
    %v314 = vadd.f32 %v127, %v313
    %v315 = vpop.f32.mrb[0].mxu0
    %v316 = vpop.f32.mrb[0].mxu0
    %v317 = vadd.f32 %v132, %v316
    %v318 = vpop.f32.mrb[0].mxu0
    %319 = vmatprep.mubr.bf16.mxu0 %v236
    %320 = vmatmul.mubr.bf16.gmra.mrb[0].mxu0 %v214
    %v321 = vpop.f32.mrb[0].mxu0
    %v322 = vadd.f32 %v137, %v321
    %v323 = vpop.f32.mrb[0].mxu0
    %v324 = vpop.f32.mrb[0].mxu0
    %v325 = vadd.f32 %v142, %v324
    %v326 = vpop.f32.mrb[0].mxu0
    %327 = vmatprep.mubr.bf16.mxu0 %v239
    %328 = vmatmul.mubr.bf16.gmra.mrb[0].mxu0 %v216
    %v329 = vpop.f32.mrb[0].mxu0
    %v330 = vadd.f32 %v147, %v329
    %v331 = vpop.f32.mrb[0].mxu0
    %v332 = vpop.f32.mrb[0].mxu0
    %v333 = vadd.f32 %v152, %v332
    %v334 = vpop.f32.mrb[0].mxu0
    %335 = vmatprep.mubr.bf16.mxu0 %v242
    %336 = vmatmul.mubr.bf16.gmra.mrb[0].mxu0 %v218
    %v337 = vpop.f32.mrb[0].mxu0
    %v338 = vadd.f32 %v157, %v337
    %v339 = vpop.f32.mrb[0].mxu0
    %v340 = vpop.f32.mrb[0].mxu0
    %v341 = vadd.f32 %v162, %v340
    %v342 = vpop.f32.mrb[0].mxu0
    %343 = vmatprep.mubr.bf16.mxu0 %v245
    %344 = vmatmul.mubr.bf16.gmra.mrb[0].mxu0 %v220
    %v345 = vpop.f32.mrb[0].mxu0
    %v346 = vadd.f32 %v167, %v345
    %v347 = vpop.f32.mrb[0].mxu0
    %v348 = vpop.f32.mrb[0].mxu0
    %v349 = vadd.f32 %v172, %v348
    %v350 = vpop.f32.mrb[0].mxu0
    %351 = vdwg.mxu0
    %v352 = vmax.f32 %v306, 0.0
    %v353 = vmax.f32 %v309, 0.0
    %v354 = vmax.f32 %v314, 0.0
    %v355 = vmax.f32 %v317, 0.0
    %v356 = vmax.f32 %v322, 0.0
    %v357 = vmax.f32 %v325, 0.0
    %v358 = vmax.f32 %v330, 0.0
    %v359 = vmax.f32 %v333, 0.0
    %v360 = vmax.f32 %v338, 0.0
    %v361 = vmax.f32 %v341, 0.0
    %v362 = vmax.f32 %v346, 0.0
    %v363 = vmax.f32 %v349, 0.0
    %v364 = vpack.c.bf16 %v353, %v352
    %v365 = vpack.c.bf16 %v355, %v354
    %v366 = vpack.c.bf16 %v357, %v356
    %v367 = vpack.c.bf16 %v359, %v358
    %v368 = vpack.c.bf16 %v361, %v360
    %v369 = vpack.c.bf16 %v363, %v362
    %v370 = vld [vmem:[%s3] sm:$0xf]
    %v371 = vld [vmem:[%s3 + $0x4] sm:$0xf]
    %v372 = vld [vmem:[%s3 + $0x8] sm:$0xf]
    %v373 = vld [vmem:[%s3 + $0xc] sm:$0xf]
    %v374 = vld [vmem:[%s3 + $0x10] sm:$0xf]
    %v375 = vld [vmem:[%s3 + $0x14] sm:$0x7]
    %v376 = vld [vmem:[%s4] sm:$0xff]
    %v377 = vld [vmem:[%s4 + $0x8] sm:$0xff]
    %v378 = vld [vmem:[%s4 + $0x10] sm:$0xff]
    %v379 = vld [vmem:[%s4 + $0x18] sm:$0xff]
    %v380 = vld [vmem:[%s4 + $0x20] sm:$0xff]
    %v381 = vld [vmem:[%s4 + $0x28] sm:$0x1f]
    %383 = vset.pattern.permute.xlu0 0
    %384 = vperm.xlu0 %383, %v376
    %v385 = vpop.permute.xlu0 %384
    %388 = vset.pattern.permute.xlu0 0
    %389 = vperm.xlu0 %388, %v377
    %v390 = vpop.permute.xlu0 %389
    %393 = vset.pattern.permute.xlu0 0
    %394 = vperm.xlu0 %393, %v378
    %v395 = vpop.permute.xlu0 %394
    %398 = vset.pattern.permute.xlu0 0
    %399 = vperm.xlu0 %398, %v379
    %v400 = vpop.permute.xlu0 %399
    %403 = vset.pattern.permute.xlu0 0
    %404 = vperm.xlu0 %403, %v380
    %v405 = vpop.permute.xlu0 %404
    %408 = vset.pattern.permute.xlu0 0
    %409 = vperm.xlu0 %408, %v381
    %v410 = vpop.permute.xlu0 %409
    %v418 = vunpack.c.l.b16 %v370
    %v419 = vunpack.c.l.b16 %v371
    %v420 = vunpack.c.l.b16 %v372
    %v421 = vunpack.c.l.b16 %v373
    %v422 = vunpack.c.l.b16 %v374
    %v423 = vunpack.c.l.b16 %v375
    %v424 = vpack.c.b16 %v419, %v418
    %v425 = vpack.c.b16 %v421, %v420
    %v426 = vpack.c.b16 %v423, %v422
    %vm427 = vcmask 736256
    %v429 = vsel %vm427, %v424, 0
    %v432 = vsel %vm427, %v425, 0
    %v435 = vsel %vm427, %v426, 0
    %vm437 = vcmask 1044480
    %v439 = vsel %vm437, %v369, 0
    %441 = vmatprep.subr.bf16.mxu0 0
    %442 = vmatpush1.bf16.msra.mxu0 %v364
    %443 = vmatprep.subr.bf16.mxu0 0
    %444 = vmatpush1.bf16.msra.mxu0 %v365
    %445 = vmatprep.subr.bf16.mxu0 0
    %446 = vmatpush1.bf16.msra.mxu0 %v366
    %447 = vmatprep.subr.bf16.mxu0 0
    %448 = vmatpush1.bf16.msra.mxu0 %v367
    %449 = vmatprep.subr.bf16.mxu0 0
    %450 = vmatpush1.bf16.msra.mxu0 %v368
    %451 = vmatprep.subr.bf16.mxu0 0
    %452 = vmatpush1.bf16.msra.mxu0 %v439
    %453 = vmatprep.subr.bf16.mxu0 0
    %454 = vmatpush1.bf16.msra.mxu0 0
    %455 = vmatprep.subr.bf16.mxu0 0
    %456 = vmatpush1.bf16.msra.mxu0 0
    %457 = vmatprep.subr.bf16.mxu0 0
    %458 = vmatpush1.bf16.msra.mxu0 0
    %459 = vmatprep.subr.bf16.mxu0 0
    %460 = vmatpush1.bf16.msra.mxu0 0
    %461 = vmatprep.subr.bf16.mxu0 0
    %462 = vmatpush1.bf16.msra.mxu0 0
    %463 = vmatprep.subr.bf16.mxu0 0
    %464 = vmatpush1.bf16.msra.mxu0 0
    %465 = vmatprep.subr.bf16.mxu0 0
    %466 = vmatpush1.bf16.msra.mxu0 0
    %467 = vmatprep.subr.bf16.mxu0 0
    %468 = vmatpush1.bf16.msra.mxu0 0
    %469 = vmatprep.subr.bf16.mxu0 0
    %470 = vmatpush1.bf16.msra.mxu0 0
    %471 = vmatprep.subr.bf16.mxu0 0
    %472 = vmatpush1.bf16.msra.mxu0 0
    %473 = vmatprep.mubr.bf16.mxu0 0
    %474 = vmatmul.mubr.bf16.gmra.mrb[0].mxu0 %v429
    %v475 = vpop.f32.mrb[0].mxu0
    %v476 = vadd.f32 %v385, %v475
    %v477 = vpop.f32.mrb[0].mxu0
    %v478 = vpop.f32.mrb[0].mxu0
    %v479 = vadd.f32 %v390, %v478
    %v480 = vpop.f32.mrb[0].mxu0
    %481 = vmatprep.mubr.bf16.mxu0 0
    %482 = vmatmul.mubr.bf16.gmra.mrb[0].mxu0 %v432
    %v483 = vpop.f32.mrb[0].mxu0
    %v484 = vadd.f32 %v395, %v483
    %v485 = vpop.f32.mrb[0].mxu0
    %v486 = vpop.f32.mrb[0].mxu0
    %v487 = vadd.f32 %v400, %v486
    %v488 = vpop.f32.mrb[0].mxu0
    %489 = vmatprep.mubr.bf16.mxu0 0
    %490 = vmatmul.mubr.bf16.gmra.mrb[0].mxu0 %v435
    %v491 = vpop.f32.mrb[0].mxu0
    %v492 = vadd.f32 %v405, %v491
    %v493 = vpop.f32.mrb[0].mxu0
    %v494 = vpop.f32.mrb[0].mxu0
    %v495 = vadd.f32 %v410, %v494
    %v496 = vpop.f32.mrb[0].mxu0
    %497 = vdwg.mxu0
    %v498 = vmax.f32 %v476, 0.0
    %v499 = vmax.f32 %v479, 0.0
    %v500 = vmax.f32 %v484, 0.0
    %v501 = vmax.f32 %v487, 0.0
    %v502 = vmax.f32 %v492, 0.0
    %v503 = vmax.f32 %v495, 0.0
    %v504 = vpack.c.bf16 %v499, %v498
    %v505 = vpack.c.bf16 %v501, %v500
    %v506 = vpack.c.bf16 %v503, %v502
    %v507 = vld [vmem:[%s5] sm:$0xf]
    %v508 = vld [vmem:[%s5 + $0x4] sm:$0xf]
    %v509 = vld [vmem:[%s5 + $0x8] sm:$0xf]
    %v510 = vld [vmem:[%s5 + $0xc] sm:$0xf]
    %v511 = vld [vmem:[%s6] sm:$0xff]
    %v512 = vld [vmem:[%s6 + $0x8] sm:$0xff]
    %v513 = vld [vmem:[%s6 + $0x10] sm:$0xff]
    %v514 = vld [vmem:[%s6 + $0x18] sm:$0xff]
    %516 = vset.pattern.permute.xlu0 0
    %517 = vperm.xlu0 %516, %v511
    %v518 = vpop.permute.xlu0 %517
    %521 = vset.pattern.permute.xlu0 0
    %522 = vperm.xlu0 %521, %v512
    %v523 = vpop.permute.xlu0 %522
    %526 = vset.pattern.permute.xlu0 0
    %527 = vperm.xlu0 %526, %v513
    %v528 = vpop.permute.xlu0 %527
    %531 = vset.pattern.permute.xlu0 0
    %532 = vperm.xlu0 %531, %v514
    %v533 = vpop.permute.xlu0 %532
    %v539 = vunpack.c.l.b16 %v507
    %v540 = vunpack.c.l.b16 %v508
    %v541 = vunpack.c.l.b16 %v509
    %v542 = vunpack.c.l.b16 %v510
    %v543 = vpack.c.b16 %v540, %v539
    %v544 = vpack.c.b16 %v542, %v541
    %vm545 = vcmask 367616
    %v547 = vsel %vm545, %v543, 0
    %v550 = vsel %vm545, %v544, 0
    %vm552 = vcmask 1045504
    %vm553 = vcmask 1046528
    %v554 = vsel %vm552, 4294967295, 65535
    %v555 = vsel %vm553, %v554, 0
    %v557 = vand.u32 %v506, %v555
    %559 = vmatprep.subr.bf16.mxu0 0
    %560 = vmatpush1.bf16.msra.mxu0 %v504
    %561 = vmatprep.subr.bf16.mxu0 0
    %562 = vmatpush1.bf16.msra.mxu0 %v505
    %563 = vmatprep.subr.bf16.mxu0 0
    %564 = vmatpush1.bf16.msra.mxu0 %v557
    %565 = vmatprep.subr.bf16.mxu0 0
    %566 = vmatpush1.bf16.msra.mxu0 0
    %567 = vmatprep.subr.bf16.mxu0 0
    %568 = vmatpush1.bf16.msra.mxu0 0
    %569 = vmatprep.subr.bf16.mxu0 0
    %570 = vmatpush1.bf16.msra.mxu0 0
    %571 = vmatprep.subr.bf16.mxu0 0
    %572 = vmatpush1.bf16.msra.mxu0 0
    %573 = vmatprep.subr.bf16.mxu0 0
    %574 = vmatpush1.bf16.msra.mxu0 0
    %575 = vmatprep.subr.bf16.mxu0 0
    %576 = vmatpush1.bf16.msra.mxu0 0
    %577 = vmatprep.subr.bf16.mxu0 0
    %578 = vmatpush1.bf16.msra.mxu0 0
    %579 = vmatprep.subr.bf16.mxu0 0
    %580 = vmatpush1.bf16.msra.mxu0 0
    %581 = vmatprep.subr.bf16.mxu0 0
    %582 = vmatpush1.bf16.msra.mxu0 0
    %583 = vmatprep.subr.bf16.mxu0 0
    %584 = vmatpush1.bf16.msra.mxu0 0
    %585 = vmatprep.subr.bf16.mxu0 0
    %586 = vmatpush1.bf16.msra.mxu0 0
    %587 = vmatprep.subr.bf16.mxu0 0
    %588 = vmatpush1.bf16.msra.mxu0 0
    %589 = vmatprep.subr.bf16.mxu0 0
    %590 = vmatpush1.bf16.msra.mxu0 0
    %591 = vmatprep.mubr.bf16.mxu0 0
    %592 = vmatmul.mubr.bf16.gmra.mrb[0].mxu0 %v547
    %v593 = vpop.f32.mrb[0].mxu0
    %v594 = vadd.f32 %v518, %v593
    %v595 = vpop.f32.mrb[0].mxu0
    %v596 = vpop.f32.mrb[0].mxu0
    %v597 = vadd.f32 %v523, %v596
    %v598 = vpop.f32.mrb[0].mxu0
    %599 = vmatprep.mubr.bf16.mxu0 0
    %600 = vmatmul.mubr.bf16.gmra.mrb[0].mxu0 %v550
    %v601 = vpop.f32.mrb[0].mxu0
    %v602 = vadd.f32 %v528, %v601
    %v603 = vpop.f32.mrb[0].mxu0
    %v604 = vpop.f32.mrb[0].mxu0
    %v605 = vadd.f32 %v533, %v604
    %v606 = vpop.f32.mrb[0].mxu0
    %607 = vdwg.mxu0
    %v608 = vmax.f32 %v594, 0.0
    %v609 = vmax.f32 %v597, 0.0
    %v610 = vmax.f32 %v602, 0.0
    %v611 = vmax.f32 %v605, 0.0
    %v612 = vpack.c.bf16 %v609, %v608
    %v613 = vpack.c.bf16 %v611, %v610
    %v614 = vld [vmem:[%s7] sm:$0xf]
    %v615 = vld [vmem:[%s7 + $0x4] sm:$0xf]
    %v616 = vld [vmem:[%s8] sm:$0xff]
    %v617 = vld [vmem:[%s8 + $0x8] sm:$0xff]
    %619 = vset.pattern.permute.xlu0 0
    %620 = vperm.xlu0 %619, %v616
    %v621 = vpop.permute.xlu0 %620
    %624 = vset.pattern.permute.xlu0 0
    %625 = vperm.xlu0 %624, %v617
    %v626 = vpop.permute.xlu0 %625
    %v630 = vunpack.c.l.b16 %v614
    %v631 = vunpack.c.l.b16 %v615
    %v632 = vpack.c.b16 %v631, %v630
    %vm633 = vcmask 261120
    %v635 = vsel %vm633, %v632, 0
    %637 = vmatprep.subr.bf16.mxu0 0
    %638 = vmatpush1.bf16.msra.mxu0 %v612
    %639 = vmatprep.subr.bf16.mxu0 0
    %640 = vmatpush1.bf16.msra.mxu0 %v613
    %641 = vmatprep.subr.bf16.mxu0 0
    %642 = vmatpush1.bf16.msra.mxu0 0
    %643 = vmatprep.subr.bf16.mxu0 0
    %644 = vmatpush1.bf16.msra.mxu0 0
    %645 = vmatprep.subr.bf16.mxu0 0
    %646 = vmatpush1.bf16.msra.mxu0 0
    %647 = vmatprep.subr.bf16.mxu0 0
    %648 = vmatpush1.bf16.msra.mxu0 0
    %649 = vmatprep.subr.bf16.mxu0 0
    %650 = vmatpush1.bf16.msra.mxu0 0
    %651 = vmatprep.subr.bf16.mxu0 0
    %652 = vmatpush1.bf16.msra.mxu0 0
    %653 = vmatprep.subr.bf16.mxu0 0
    %654 = vmatpush1.bf16.msra.mxu0 0
    %655 = vmatprep.subr.bf16.mxu0 0
    %656 = vmatpush1.bf16.msra.mxu0 0
    %657 = vmatprep.subr.bf16.mxu0 0
    %658 = vmatpush1.bf16.msra.mxu0 0
    %659 = vmatprep.subr.bf16.mxu0 0
    %660 = vmatpush1.bf16.msra.mxu0 0
    %661 = vmatprep.subr.bf16.mxu0 0
    %662 = vmatpush1.bf16.msra.mxu0 0
    %663 = vmatprep.subr.bf16.mxu0 0
    %664 = vmatpush1.bf16.msra.mxu0 0
    %665 = vmatprep.subr.bf16.mxu0 0
    %666 = vmatpush1.bf16.msra.mxu0 0
    %667 = vmatprep.subr.bf16.mxu0 0
    %668 = vmatpush1.bf16.msra.mxu0 0
    %669 = vmatprep.mubr.bf16.mxu0 0
    %670 = vmatmul.mubr.bf16.gmra.mrb[0].mxu0 %v635
    %v671 = vpop.f32.mrb[0].mxu0
    %v672 = vadd.f32 %v621, %v671
    %v673 = vpop.f32.mrb[0].mxu0
    %v674 = vpop.f32.mrb[0].mxu0
    %v675 = vadd.f32 %v626, %v674
    %v676 = vpop.f32.mrb[0].mxu0
    %677 = vdwg.mxu0
    %v678 = vmax.f32 %v672, 0.0
    %v679 = vmax.f32 %v675, 0.0
    %v680 = vpack.c.bf16 %v679, %v678
    %v681 = vunpack.c.l.bf16 %v680
    %v682 = vunpack.c.h.bf16 %v680
    %v683 = vld [vmem:[%s9] sm:$0xf]
    %v684 = vld [vmem:[%s9 + $0x4] sm:$0xf]
    %v685 = vunpack.c.l.bf16 %v683
    %v686 = vunpack.c.l.bf16 %v684
    %688 = vset.pattern.permute.xlu0 0
    %689 = vperm.xlu0 %688, %v685
    %v690 = vpop.permute.xlu0 %689
    %693 = vset.pattern.permute.xlu0 0
    %694 = vperm.xlu0 %693, %v686
    %v695 = vpop.permute.xlu0 %694
    %v697 = vmul.f32 %v690, %v681
    %v698 = vmul.f32 %v695, %v682
    %v699 = vadd.f32 %v697, %v698
    %v700 = vrot.slane %v699, 4
    %v701 = vadd.f32 %v699, %v700
    %v702 = vrot.slane %v701, 2
    %v703 = vadd.f32 %v701, %v702
    %v704 = vrot.slane %v703, 1
    %v705 = vadd.f32 %v703, %v704
    %v706 = vld [vmem:[#allocation2] sm:$0x1]
    %708 = vset.pattern.permute.xlu0 0
    %709 = vperm.xlu0 %708, %v706
    %v710 = vpop.permute.xlu0 %709
    %v712 = vlaneseq
    %v713 = vshrl.u32 %v712, 7
    %v714 = vsub.s32 0, %v713
    %v715 = vrot.slane %v710, %v714
    %v716 = vadd.f32 %v705, %v715
    %717 = vst [vmem:[#allocation3] sm:$0x1] %v716
    // Predicated region
    $region46: #{tpu_custom_call.1} parent=1 // pred_check
      _
    $region47: #{tpu_custom_call.1} parent=1 // pred_check_branch
      %719 = sbr.rel (0) target = $region49
    $region48: #{tpu_custom_call.1} parent=1 // pred_region
      %s721 = ssub.s32 16, 16
      %722 = vsyncadd [#allocation4], %s721
      %s724 = sshll.u32 [#allocation3], 4
      %s725 = int_to_ptr.vmem [resolvable:$true] %s724
      %727 = dma.vmem_to_hbm [thread:$0]  %s725, 16, %s11, [#allocation4]
    $region49: #{tpu_custom_call.1} parent=1 // pred_fallthru
      _
    // Predicated region
    $region50: #{tpu_custom_call.1} parent=1 // pred_check
      _
    $region51: #{tpu_custom_call.1} parent=1 // pred_check_branch
      %729 = sbr.rel (0) target = $region53
    $region52: #{tpu_custom_call.1} parent=1 // pred_region
      %730 = dma.done [#allocation4], 16
    $region53: #{tpu_custom_call.1} parent=1 // pred_fallthru
      _
    %731 = vsyncpa [#allocation4], 1

</llo_original>
